<compile_context>
chip_gen: v7x
topology: tpu7x:2x2x1
jax: 0.10.0
libtpu: 0.0.40
codegen_flags: <defaults>
</compile_context>

<pallas_src>
import functools

import numpy as np
import jax
import jax.numpy as jnp
from jax import lax
from jax.experimental import pallas as pl
from jax.experimental.pallas import tpu as pltpu


def _conv_groups(img_blk, w_ref, m_ref, *, K, KS, HW, W):
    """Shared compute: log -> channel diffs -> KSxKS mean-constrained conv.

    img_blk: (3, HW) f32, one image with spatial flattened onto the lane axis.
    w_ref:   VMEM (K, KS*KS) mean-centered filter taps.
    m_ref:   VMEM (KS*KS, HW) per-tap 'same' zero-padding validity masks.
    Returns [conv_rg, conv_gb, conv_rb], each (K, HW) f32.

    Used identically by both passes so the BN statistics and the normalized
    outputs are computed from bit-identical conv values.
    """
    pad = KS // 2
    ntaps = KS * KS

    log_img = jnp.log(img_blk + 1e-7)
    r = log_img[0:1, :]
    g = log_img[1:2, :]
    b = log_img[2:3, :]
    # conv(r, W) + conv(g, -W) == conv(r - g, W): conv is linear, no bias.
    diffs = (r - g, g - b, r - b)                       # rg, gb, rb  (1, HW)

    # Hoisted once per block (reused across all groups and all K filters).
    w_cols = [w_ref[:, t:t + 1] for t in range(ntaps)]  # (K, 1) each
    m_rows = [m_ref[t:t + 1, :] for t in range(ntaps)]  # (1, HW) each
    offs = [((t // KS) - pad) * W + ((t % KS) - pad) for t in range(ntaps)]

    convs = []
    for d in diffs:
        acc = jnp.zeros((K, HW), jnp.float32)
        for t in range(ntaps):
            off = offs[t]
            # Shifted view s[p] = d[p + off] via an XLU lane rotation; wrapped
            # / out-of-image contributions are zeroed by the validity mask
            # (this is the 'same' zero padding of F.conv2d).
            s = d if off == 0 else pltpu.roll(d, (-off) % HW, axis=1)
            s = s * m_rows[t]
            acc = acc + w_cols[t] * s                   # (K,1)*(1,HW)->(K,HW)
        convs.append(acc)
    return convs


def _stats_kernel(w_ref, m_ref, img_ref, stats_ref, *, K, KS, HW, W):
    """Pass 1: accumulate per-(group, filter) sum and sum-of-squares."""
    @pl.when(pl.program_id(0) == 0)
    def _init():
        stats_ref[...] = jnp.zeros_like(stats_ref)

    convs = _conv_groups(img_ref[...], w_ref, m_ref, K=K, KS=KS, HW=HW, W=W)
    for gi, cg in enumerate(convs):
        sl = slice(gi * K, (gi + 1) * K)
        stats_ref[sl, 0:1] += jnp.sum(cg, axis=1, keepdims=True)        # sum
        stats_ref[sl, 1:2] += jnp.sum(cg * cg, axis=1, keepdims=True)   # sumsq


def _apply_kernel(w_ref, m_ref, bn_ref, img_ref, out_ref, *, K, KS, HW, W):
    """Pass 2: recompute conv, apply BN (mean/scale), zero-mask, write output."""
    img_blk = img_ref[...]                               # (3, HW)
    convs = _conv_groups(img_blk, w_ref, m_ref, K=K, KS=KS, HW=HW, W=W)
    for gi, cg in enumerate(convs):
        sl = slice(gi * K, (gi + 1) * K)
        mean = bn_ref[sl, 0:1]                           # (K, 1)
        scale = bn_ref[sl, 1:2]                          # (K, 1) = 0.01*rsqrt
        y = (cg - mean) * scale
        # zero-pixel mask of the group's source channel, applied AFTER BN
        y = jnp.where(img_blk[gi:gi + 1, :] == 0.0, 0.0, y)
        out_ref[sl, :] = y                               # dense (K, HW) store


def reflected_convolution(img, filt, kernel_nums=8, kernel_size=3,
                          bn_weight=0.01, bn_eps=1e-5):
    """img: (N, 3, H, W) float32 (PyTorch NCHW); filt: (K, 1, KS, KS)."""
    N, C, H, W = img.shape
    assert C == 3, "ReflectedConvolution expects a 3-channel (RGB) image"
    K, KS = kernel_nums, kernel_size
    ntaps = KS * KS
    HW = H * W

    # Lane-dense layout: spatial flattened onto the lane axis (no transpose
    # needed; the output comes back already channel-ordered as [rg|gb|rb]).
    img_f = img.reshape(N, 3, HW).astype(jnp.float32)

    # Mean-constrained ("reflected") filter, centered once in the wrapper.
    w_flat = filt.reshape(K, ntaps).astype(jnp.float32)
    w_c = w_flat - jnp.mean(w_flat, axis=1, keepdims=True)           # (K, 9)

    # Per-tap validity masks for the 'same' zero padding, flattened like img.
    pad = KS // 2
    ys, xs = np.meshgrid(np.arange(H), np.arange(W), indexing="ij")
    ys = ys.reshape(-1)
    xs = xs.reshape(-1)
    m_np = np.zeros((ntaps, HW), np.float32)
    for t in range(ntaps):
        dy, dx = divmod(t, KS)
        sy = ys + (dy - pad)
        sx = xs + (dx - pad)
        m_np[t] = ((sy >= 0) & (sy < H) & (sx >= 0) & (sx < W)).astype(np.float32)
    masks = jnp.asarray(m_np)                                         # (9, HW)

    const_spec_w = pl.BlockSpec((K, ntaps), lambda n: (0, 0))
    const_spec_m = pl.BlockSpec((ntaps, HW), lambda n: (0, 0))
    img_spec = pl.BlockSpec((None, 3, HW), lambda n: (n, 0, 0))
    vmem_limit = 32 * 1024 * 1024   # safe on v5e/v6e/v7x; per-step use << this

    # ---- pass 1: streaming conv + per-(group, filter) sum / sumsq ----------
    stats = pl.pallas_call(
        functools.partial(_stats_kernel, K=K, KS=KS, HW=HW, W=W),
        out_shape=jax.ShapeDtypeStruct((3 * K, 2), jnp.float32),
        grid=(N,),
        in_specs=[const_spec_w, const_spec_m, img_spec],
        out_specs=pl.BlockSpec((3 * K, 2), lambda n: (0, 0)),
        compiler_params=pltpu.CompilerParams(
            dimension_semantics=("arbitrary",),      # accumulator is revisited
            vmem_limit_bytes=vmem_limit),
    )(w_c, masks, img_f)

    # Fold raw sums into per-channel (mean, scale): 3*K-element glue between
    # the two streaming passes.  Training-mode BatchNorm2d: biased variance,
    # weight=0.01, bias=0, eps=1e-5.
    cnt = jnp.float32(N * HW)
    mean = stats[:, 0] / cnt
    var = jnp.maximum(stats[:, 1] / cnt - mean * mean, 0.0)
    scale = bn_weight * lax.rsqrt(var + bn_eps)
    bn_params = jnp.stack([mean, scale], axis=1)                      # (3K, 2)

    # ---- pass 2: recompute conv, normalize, zero-mask, write output --------
    out = pl.pallas_call(
        functools.partial(_apply_kernel, K=K, KS=KS, HW=HW, W=W),
        out_shape=jax.ShapeDtypeStruct((N, 3 * K, HW), jnp.float32),
        grid=(N,),
        in_specs=[const_spec_w, const_spec_m,
                  pl.BlockSpec((3 * K, 2), lambda n: (0, 0)),
                  img_spec],
        out_specs=pl.BlockSpec((None, 3 * K, HW), lambda n: (n, 0, 0)),
        compiler_params=pltpu.CompilerParams(
            dimension_semantics=("parallel",),       # independent per image
            vmem_limit_bytes=vmem_limit),
    )(w_c, masks, bn_params, img_f)

    return out.reshape(N, 3 * K, H, W)


def reference_forward(img, filt, kernel_nums=8, kernel_size=3):
    """Pure-JAX reference mirroring the PyTorch module (training-mode BN)."""
    K, KS = kernel_nums, kernel_size
    nf = filt.reshape(K, -1)
    nf = nf - jnp.mean(nf, axis=1, keepdims=True)
    nf = nf.reshape(K, 1, KS, KS)
    log_img = jnp.log(img + 1e-7)
    pairs = [(0, 1), (1, 2), (0, 2)]                     # rg, gb, rb
    outs = []
    for gidx, (ai, bi) in enumerate(pairs):
        x = (log_img[:, ai] - log_img[:, bi])[:, None]   # (N,1,H,W)
        f = lax.conv_general_dilated(
            x, nf, (1, 1), [(KS // 2, KS // 2)] * 2,
            dimension_numbers=('NCHW', 'OIHW', 'NCHW'))
        m = jnp.mean(f, axis=(0, 2, 3), keepdims=True)
        v = jnp.mean((f - m) ** 2, axis=(0, 2, 3), keepdims=True)
        y = (f - m) / jnp.sqrt(v + 1e-5) * 0.01
        y = jnp.where(img[:, gidx:gidx + 1] == 0.0, 0.0, y)
        outs.append(y)
    return jnp.concatenate(outs, axis=1)


if __name__ == "__main__":
    key = jax.random.PRNGKey(0)
    k_img, k_filt = jax.random.split(key)

    N, C, H, W = 2, 3, 16, 16
    K, KS = 8, 3

    img = jax.random.uniform(k_img, (N, C, H, W), jnp.float32,
                             minval=0.0, maxval=1.0)
    # exact zero pixels so the zero-mask path is exercised
    img = img.at[0, 0, 0:2, 0:3].set(0.0)
    img = img.at[1, 1, 5:7, 8:10].set(0.0)
    img = img.at[1, 2, 3, 4].set(0.0)

    # torch.nn.init.kaiming_normal_ on (K,1,KS,KS): fan_in = KS*KS, gain=sqrt(2)
    std = float(np.sqrt(2.0 / (KS * KS)))
    filt = jax.random.normal(k_filt, (K, 1, KS, KS), jnp.float32) * std

    out = reflected_convolution(img, filt, K, KS)
    out = jax.block_until_ready(out)

    ref = reference_forward(img, filt, K, KS)
    np.testing.assert_allclose(np.asarray(out), np.asarray(ref),
                               rtol=1e-3, atol=1e-5)
    assert out.shape == (N, 3 * K, H, W)
    print("KERNEL_OK")
</pallas_src>

<mosaic_0001>
module attributes {stable_mosaic.version = 11 : i64} {
  func.func @_stats_kernel(%arg0: i32, %arg1: memref<8x9xf32, #tpu.memory_space<vmem>>, %arg2: memref<9x256xf32, #tpu.memory_space<vmem>>, %arg3: memref<1x3x256xf32, #tpu.memory_space<vmem>>, %arg4: memref<24x2xf32, #tpu.memory_space<vmem>>) attributes {dimension_semantics = [#tpu.dimension_semantics<arbitrary>], iteration_bounds = array<i64: 2>, scalar_prefetch = 0 : i64, scratch_operands = 0 : i64, tpu.core_type = #tpu.core_type<tc>, window_params = [{pipeline_mode = #tpu.pipeline_mode<synchronous>, transform_indices = @transform_0, window_bounds = array<i64: 8, 9>}, {pipeline_mode = #tpu.pipeline_mode<synchronous>, transform_indices = @transform_1, window_bounds = array<i64: 9, 256>}, {transform_indices = @transform_2, window_bounds = array<i64: 1, 3, 256>}, {pipeline_mode = #tpu.pipeline_mode<synchronous>, transform_indices = @transform_3, window_bounds = array<i64: 24, 2>}]} {
    %c0_i32 = arith.constant 0 : i32
    %0 = arith.cmpi eq, %arg0, %c0_i32 : i32
    %1 = arith.extui %0 : i1 to i32
    %c0_i32_0 = arith.constant 0 : i32
    %2 = arith.cmpi ne, %1, %c0_i32_0 : i32
    scf.if %2 {
      %cst_79 = arith.constant 0.000000e+00 : f32
      %227 = vector.broadcast %cst_79 : f32 to vector<24x2xf32>
      %c0_80 = arith.constant 0 : index
      %c0_81 = arith.constant 0 : index
      %228 = vector.load %arg4[%c0_80, %c0_81] : memref<24x2xf32, #tpu.memory_space<vmem>>, vector<24x2xf32>
      tpu.vector_store %arg4[%c0_80, %c0_81], %227 {strides = array<i32>} : memref<24x2xf32, #tpu.memory_space<vmem>>, vector<24x2xf32>,
    } else {
    }
    %c0 = arith.constant 0 : index
    %c0_1 = arith.constant 0 : index
    %c0_2 = arith.constant 0 : index
    %3 = vector.load %arg3[%c0, %c0_1, %c0_2] : memref<1x3x256xf32, #tpu.memory_space<vmem>>, vector<1x3x256xf32>
    %4 = vector.shape_cast %3 : vector<1x3x256xf32> to vector<3x256xf32>
    %cst = arith.constant 1.000000e-07 : f32
    %5 = vector.broadcast %cst : f32 to vector<3x256xf32>
    %6 = arith.addf %4, %5 : vector<3x256xf32>
    %7 = math.log %6 : vector<3x256xf32>
    %8 = vector.extract_strided_slice %7 {offsets = [0, 0], sizes = [1, 256], strides = [1, 1]} : vector<3x256xf32> to vector<1x256xf32>
    %9 = vector.extract_strided_slice %7 {offsets = [1, 0], sizes = [1, 256], strides = [1, 1]} : vector<3x256xf32> to vector<1x256xf32>
    %10 = vector.extract_strided_slice %7 {offsets = [2, 0], sizes = [1, 256], strides = [1, 1]} : vector<3x256xf32> to vector<1x256xf32>
    %11 = arith.subf %8, %9 : vector<1x256xf32>
    %12 = arith.subf %9, %10 : vector<1x256xf32>
    %13 = arith.subf %8, %10 : vector<1x256xf32>
    %c0_3 = arith.constant 0 : index
    %c0_4 = arith.constant 0 : index
    %14 = vector.load %arg1[%c0_3, %c0_4] : memref<8x9xf32, #tpu.memory_space<vmem>>, vector<8x1xf32>
    %c0_5 = arith.constant 0 : index
    %c1 = arith.constant 1 : index
    %15 = vector.load %arg1[%c0_5, %c1] : memref<8x9xf32, #tpu.memory_space<vmem>>, vector<8x1xf32>
    %c0_6 = arith.constant 0 : index
    %c2 = arith.constant 2 : index
    %16 = vector.load %arg1[%c0_6, %c2] : memref<8x9xf32, #tpu.memory_space<vmem>>, vector<8x1xf32>
    %c0_7 = arith.constant 0 : index
    %c3 = arith.constant 3 : index
    %17 = vector.load %arg1[%c0_7, %c3] : memref<8x9xf32, #tpu.memory_space<vmem>>, vector<8x1xf32>
    %c0_8 = arith.constant 0 : index
    %c4 = arith.constant 4 : index
    %18 = vector.load %arg1[%c0_8, %c4] : memref<8x9xf32, #tpu.memory_space<vmem>>, vector<8x1xf32>
    %c0_9 = arith.constant 0 : index
    %c5 = arith.constant 5 : index
    %19 = vector.load %arg1[%c0_9, %c5] : memref<8x9xf32, #tpu.memory_space<vmem>>, vector<8x1xf32>
    %c0_10 = arith.constant 0 : index
    %c6 = arith.constant 6 : index
    %20 = vector.load %arg1[%c0_10, %c6] : memref<8x9xf32, #tpu.memory_space<vmem>>, vector<8x1xf32>
    %c0_11 = arith.constant 0 : index
    %c7 = arith.constant 7 : index
    %21 = vector.load %arg1[%c0_11, %c7] : memref<8x9xf32, #tpu.memory_space<vmem>>, vector<8x1xf32>
    %c0_12 = arith.constant 0 : index
    %c8 = arith.constant 8 : index
    %22 = vector.load %arg1[%c0_12, %c8] : memref<8x9xf32, #tpu.memory_space<vmem>>, vector<8x1xf32>
    %c0_13 = arith.constant 0 : index
    %c0_14 = arith.constant 0 : index
    %23 = vector.load %arg2[%c0_13, %c0_14] : memref<9x256xf32, #tpu.memory_space<vmem>>, vector<1x256xf32>
    %c1_15 = arith.constant 1 : index
    %c0_16 = arith.constant 0 : index
    %24 = vector.load %arg2[%c1_15, %c0_16] : memref<9x256xf32, #tpu.memory_space<vmem>>, vector<1x256xf32>
    %c2_17 = arith.constant 2 : index
    %c0_18 = arith.constant 0 : index
    %25 = vector.load %arg2[%c2_17, %c0_18] : memref<9x256xf32, #tpu.memory_space<vmem>>, vector<1x256xf32>
    %c3_19 = arith.constant 3 : index
    %c0_20 = arith.constant 0 : index
    %26 = vector.load %arg2[%c3_19, %c0_20] : memref<9x256xf32, #tpu.memory_space<vmem>>, vector<1x256xf32>
    %c4_21 = arith.constant 4 : index
    %c0_22 = arith.constant 0 : index
    %27 = vector.load %arg2[%c4_21, %c0_22] : memref<9x256xf32, #tpu.memory_space<vmem>>, vector<1x256xf32>
    %c5_23 = arith.constant 5 : index
    %c0_24 = arith.constant 0 : index
    %28 = vector.load %arg2[%c5_23, %c0_24] : memref<9x256xf32, #tpu.memory_space<vmem>>, vector<1x256xf32>
    %c6_25 = arith.constant 6 : index
    %c0_26 = arith.constant 0 : index
    %29 = vector.load %arg2[%c6_25, %c0_26] : memref<9x256xf32, #tpu.memory_space<vmem>>, vector<1x256xf32>
    %c7_27 = arith.constant 7 : index
    %c0_28 = arith.constant 0 : index
    %30 = vector.load %arg2[%c7_27, %c0_28] : memref<9x256xf32, #tpu.memory_space<vmem>>, vector<1x256xf32>
    %c8_29 = arith.constant 8 : index
    %c0_30 = arith.constant 0 : index
    %31 = vector.load %arg2[%c8_29, %c0_30] : memref<9x256xf32, #tpu.memory_space<vmem>>, vector<1x256xf32>
    %cst_31 = arith.constant 0.000000e+00 : f32
    %32 = vector.broadcast %cst_31 : f32 to vector<8x256xf32>
    %c17_i32 = arith.constant 17 : i32
    %33 = tpu.dynamic_rotate %11 by %c17_i32 dim 1 : vector<1x256xf32>, i32 -> vector<1x256xf32>
    %34 = arith.mulf %33, %23 : vector<1x256xf32>
    %35 = vector.broadcast %14 : vector<8x1xf32> to vector<8x256xf32>
    %36 = vector.broadcast %34 : vector<1x256xf32> to vector<8x256xf32>
    %37 = arith.mulf %35, %36 : vector<8x256xf32>
    %38 = arith.addf %32, %37 : vector<8x256xf32>
    %c16_i32 = arith.constant 16 : i32
    %39 = tpu.dynamic_rotate %11 by %c16_i32 dim 1 : vector<1x256xf32>, i32 -> vector<1x256xf32>
    %40 = arith.mulf %39, %24 : vector<1x256xf32>
    %41 = vector.broadcast %15 : vector<8x1xf32> to vector<8x256xf32>
    %42 = vector.broadcast %40 : vector<1x256xf32> to vector<8x256xf32>
    %43 = arith.mulf %41, %42 : vector<8x256xf32>
    %44 = arith.addf %38, %43 : vector<8x256xf32>
    %c15_i32 = arith.constant 15 : i32
    %45 = tpu.dynamic_rotate %11 by %c15_i32 dim 1 : vector<1x256xf32>, i32 -> vector<1x256xf32>
    %46 = arith.mulf %45, %25 : vector<1x256xf32>
    %47 = vector.broadcast %16 : vector<8x1xf32> to vector<8x256xf32>
    %48 = vector.broadcast %46 : vector<1x256xf32> to vector<8x256xf32>
    %49 = arith.mulf %47, %48 : vector<8x256xf32>
    %50 = arith.addf %44, %49 : vector<8x256xf32>
    %c1_i32 = arith.constant 1 : i32
    %51 = tpu.dynamic_rotate %11 by %c1_i32 dim 1 : vector<1x256xf32>, i32 -> vector<1x256xf32>
    %52 = arith.mulf %51, %26 : vector<1x256xf32>
    %53 = vector.broadcast %17 : vector<8x1xf32> to vector<8x256xf32>
    %54 = vector.broadcast %52 : vector<1x256xf32> to vector<8x256xf32>
    %55 = arith.mulf %53, %54 : vector<8x256xf32>
    %56 = arith.addf %50, %55 : vector<8x256xf32>
    %57 = arith.mulf %11, %27 : vector<1x256xf32>
    %58 = vector.broadcast %18 : vector<8x1xf32> to vector<8x256xf32>
    %59 = vector.broadcast %57 : vector<1x256xf32> to vector<8x256xf32>
    %60 = arith.mulf %58, %59 : vector<8x256xf32>
    %61 = arith.addf %56, %60 : vector<8x256xf32>
    %c255_i32 = arith.constant 255 : i32
    %62 = tpu.dynamic_rotate %11 by %c255_i32 dim 1 : vector<1x256xf32>, i32 -> vector<1x256xf32>
    %63 = arith.mulf %62, %28 : vector<1x256xf32>
    %64 = vector.broadcast %19 : vector<8x1xf32> to vector<8x256xf32>
    %65 = vector.broadcast %63 : vector<1x256xf32> to vector<8x256xf32>
    %66 = arith.mulf %64, %65 : vector<8x256xf32>
    %67 = arith.addf %61, %66 : vector<8x256xf32>
    %c241_i32 = arith.constant 241 : i32
    %68 = tpu.dynamic_rotate %11 by %c241_i32 dim 1 : vector<1x256xf32>, i32 -> vector<1x256xf32>
    %69 = arith.mulf %68, %29 : vector<1x256xf32>
    %70 = vector.broadcast %20 : vector<8x1xf32> to vector<8x256xf32>
    %71 = vector.broadcast %69 : vector<1x256xf32> to vector<8x256xf32>
    %72 = arith.mulf %70, %71 : vector<8x256xf32>
    %73 = arith.addf %67, %72 : vector<8x256xf32>
    %c240_i32 = arith.constant 240 : i32
    %74 = tpu.dynamic_rotate %11 by %c240_i32 dim 1 : vector<1x256xf32>, i32 -> vector<1x256xf32>
    %75 = arith.mulf %74, %30 : vector<1x256xf32>
    %76 = vector.broadcast %21 : vector<8x1xf32> to vector<8x256xf32>
    %77 = vector.broadcast %75 : vector<1x256xf32> to vector<8x256xf32>
    %78 = arith.mulf %76, %77 : vector<8x256xf32>
    %79 = arith.addf %73, %78 : vector<8x256xf32>
    %c239_i32 = arith.constant 239 : i32
    %80 = tpu.dynamic_rotate %11 by %c239_i32 dim 1 : vector<1x256xf32>, i32 -> vector<1x256xf32>
    %81 = arith.mulf %80, %31 : vector<1x256xf32>
    %82 = vector.broadcast %22 : vector<8x1xf32> to vector<8x256xf32>
    %83 = vector.broadcast %81 : vector<1x256xf32> to vector<8x256xf32>
    %84 = arith.mulf %82, %83 : vector<8x256xf32>
    %85 = arith.addf %79, %84 : vector<8x256xf32>
    %cst_32 = arith.constant 0.000000e+00 : f32
    %86 = vector.broadcast %cst_32 : f32 to vector<8x256xf32>
    %c17_i32_33 = arith.constant 17 : i32
    %87 = tpu.dynamic_rotate %12 by %c17_i32_33 dim 1 : vector<1x256xf32>, i32 -> vector<1x256xf32>
    %88 = arith.mulf %87, %23 : vector<1x256xf32>
    %89 = vector.broadcast %14 : vector<8x1xf32> to vector<8x256xf32>
    %90 = vector.broadcast %88 : vector<1x256xf32> to vector<8x256xf32>
    %91 = arith.mulf %89, %90 : vector<8x256xf32>
    %92 = arith.addf %86, %91 : vector<8x256xf32>
    %c16_i32_34 = arith.constant 16 : i32
    %93 = tpu.dynamic_rotate %12 by %c16_i32_34 dim 1 : vector<1x256xf32>, i32 -> vector<1x256xf32>
    %94 = arith.mulf %93, %24 : vector<1x256xf32>
    %95 = vector.broadcast %15 : vector<8x1xf32> to vector<8x256xf32>
    %96 = vector.broadcast %94 : vector<1x256xf32> to vector<8x256xf32>
    %97 = arith.mulf %95, %96 : vector<8x256xf32>
    %98 = arith.addf %92, %97 : vector<8x256xf32>
    %c15_i32_35 = arith.constant 15 : i32
    %99 = tpu.dynamic_rotate %12 by %c15_i32_35 dim 1 : vector<1x256xf32>, i32 -> vector<1x256xf32>
    %100 = arith.mulf %99, %25 : vector<1x256xf32>
    %101 = vector.broadcast %16 : vector<8x1xf32> to vector<8x256xf32>
    %102 = vector.broadcast %100 : vector<1x256xf32> to vector<8x256xf32>
    %103 = arith.mulf %101, %102 : vector<8x256xf32>
    %104 = arith.addf %98, %103 : vector<8x256xf32>
    %c1_i32_36 = arith.constant 1 : i32
    %105 = tpu.dynamic_rotate %12 by %c1_i32_36 dim 1 : vector<1x256xf32>, i32 -> vector<1x256xf32>
    %106 = arith.mulf %105, %26 : vector<1x256xf32>
    %107 = vector.broadcast %17 : vector<8x1xf32> to vector<8x256xf32>
    %108 = vector.broadcast %106 : vector<1x256xf32> to vector<8x256xf32>
    %109 = arith.mulf %107, %108 : vector<8x256xf32>
    %110 = arith.addf %104, %109 : vector<8x256xf32>
    %111 = arith.mulf %12, %27 : vector<1x256xf32>
    %112 = vector.broadcast %18 : vector<8x1xf32> to vector<8x256xf32>
    %113 = vector.broadcast %111 : vector<1x256xf32> to vector<8x256xf32>
    %114 = arith.mulf %112, %113 : vector<8x256xf32>
    %115 = arith.addf %110, %114 : vector<8x256xf32>
    %c255_i32_37 = arith.constant 255 : i32
    %116 = tpu.dynamic_rotate %12 by %c255_i32_37 dim 1 : vector<1x256xf32>, i32 -> vector<1x256xf32>
    %117 = arith.mulf %116, %28 : vector<1x256xf32>
    %118 = vector.broadcast %19 : vector<8x1xf32> to vector<8x256xf32>
    %119 = vector.broadcast %117 : vector<1x256xf32> to vector<8x256xf32>
    %120 = arith.mulf %118, %119 : vector<8x256xf32>
    %121 = arith.addf %115, %120 : vector<8x256xf32>
    %c241_i32_38 = arith.constant 241 : i32
    %122 = tpu.dynamic_rotate %12 by %c241_i32_38 dim 1 : vector<1x256xf32>, i32 -> vector<1x256xf32>
    %123 = arith.mulf %122, %29 : vector<1x256xf32>
    %124 = vector.broadcast %20 : vector<8x1xf32> to vector<8x256xf32>
    %125 = vector.broadcast %123 : vector<1x256xf32> to vector<8x256xf32>
    %126 = arith.mulf %124, %125 : vector<8x256xf32>
    %127 = arith.addf %121, %126 : vector<8x256xf32>
    %c240_i32_39 = arith.constant 240 : i32
    %128 = tpu.dynamic_rotate %12 by %c240_i32_39 dim 1 : vector<1x256xf32>, i32 -> vector<1x256xf32>
    %129 = arith.mulf %128, %30 : vector<1x256xf32>
    %130 = vector.broadcast %21 : vector<8x1xf32> to vector<8x256xf32>
    %131 = vector.broadcast %129 : vector<1x256xf32> to vector<8x256xf32>
    %132 = arith.mulf %130, %131 : vector<8x256xf32>
    %133 = arith.addf %127, %132 : vector<8x256xf32>
    %c239_i32_40 = arith.constant 239 : i32
    %134 = tpu.dynamic_rotate %12 by %c239_i32_40 dim 1 : vector<1x256xf32>, i32 -> vector<1x256xf32>
    %135 = arith.mulf %134, %31 : vector<1x256xf32>
    %136 = vector.broadcast %22 : vector<8x1xf32> to vector<8x256xf32>
    %137 = vector.broadcast %135 : vector<1x256xf32> to vector<8x256xf32>
    %138 = arith.mulf %136, %137 : vector<8x256xf32>
    %139 = arith.addf %133, %138 : vector<8x256xf32>
    %cst_41 = arith.constant 0.000000e+00 : f32
    %140 = vector.broadcast %cst_41 : f32 to vector<8x256xf32>
    %c17_i32_42 = arith.constant 17 : i32
    %141 = tpu.dynamic_rotate %13 by %c17_i32_42 dim 1 : vector<1x256xf32>, i32 -> vector<1x256xf32>
    %142 = arith.mulf %141, %23 : vector<1x256xf32>
    %143 = vector.broadcast %14 : vector<8x1xf32> to vector<8x256xf32>
    %144 = vector.broadcast %142 : vector<1x256xf32> to vector<8x256xf32>
    %145 = arith.mulf %143, %144 : vector<8x256xf32>
    %146 = arith.addf %140, %145 : vector<8x256xf32>
    %c16_i32_43 = arith.constant 16 : i32
    %147 = tpu.dynamic_rotate %13 by %c16_i32_43 dim 1 : vector<1x256xf32>, i32 -> vector<1x256xf32>
    %148 = arith.mulf %147, %24 : vector<1x256xf32>
    %149 = vector.broadcast %15 : vector<8x1xf32> to vector<8x256xf32>
    %150 = vector.broadcast %148 : vector<1x256xf32> to vector<8x256xf32>
    %151 = arith.mulf %149, %150 : vector<8x256xf32>
    %152 = arith.addf %146, %151 : vector<8x256xf32>
    %c15_i32_44 = arith.constant 15 : i32
    %153 = tpu.dynamic_rotate %13 by %c15_i32_44 dim 1 : vector<1x256xf32>, i32 -> vector<1x256xf32>
    %154 = arith.mulf %153, %25 : vector<1x256xf32>
    %155 = vector.broadcast %16 : vector<8x1xf32> to vector<8x256xf32>
    %156 = vector.broadcast %154 : vector<1x256xf32> to vector<8x256xf32>
    %157 = arith.mulf %155, %156 : vector<8x256xf32>
    %158 = arith.addf %152, %157 : vector<8x256xf32>
    %c1_i32_45 = arith.constant 1 : i32
    %159 = tpu.dynamic_rotate %13 by %c1_i32_45 dim 1 : vector<1x256xf32>, i32 -> vector<1x256xf32>
    %160 = arith.mulf %159, %26 : vector<1x256xf32>
    %161 = vector.broadcast %17 : vector<8x1xf32> to vector<8x256xf32>
    %162 = vector.broadcast %160 : vector<1x256xf32> to vector<8x256xf32>
    %163 = arith.mulf %161, %162 : vector<8x256xf32>
    %164 = arith.addf %158, %163 : vector<8x256xf32>
    %165 = arith.mulf %13, %27 : vector<1x256xf32>
    %166 = vector.broadcast %18 : vector<8x1xf32> to vector<8x256xf32>
    %167 = vector.broadcast %165 : vector<1x256xf32> to vector<8x256xf32>
    %168 = arith.mulf %166, %167 : vector<8x256xf32>
    %169 = arith.addf %164, %168 : vector<8x256xf32>
    %c255_i32_46 = arith.constant 255 : i32
    %170 = tpu.dynamic_rotate %13 by %c255_i32_46 dim 1 : vector<1x256xf32>, i32 -> vector<1x256xf32>
    %171 = arith.mulf %170, %28 : vector<1x256xf32>
    %172 = vector.broadcast %19 : vector<8x1xf32> to vector<8x256xf32>
    %173 = vector.broadcast %171 : vector<1x256xf32> to vector<8x256xf32>
    %174 = arith.mulf %172, %173 : vector<8x256xf32>
    %175 = arith.addf %169, %174 : vector<8x256xf32>
    %c241_i32_47 = arith.constant 241 : i32
    %176 = tpu.dynamic_rotate %13 by %c241_i32_47 dim 1 : vector<1x256xf32>, i32 -> vector<1x256xf32>
    %177 = arith.mulf %176, %29 : vector<1x256xf32>
    %178 = vector.broadcast %20 : vector<8x1xf32> to vector<8x256xf32>
    %179 = vector.broadcast %177 : vector<1x256xf32> to vector<8x256xf32>
    %180 = arith.mulf %178, %179 : vector<8x256xf32>
    %181 = arith.addf %175, %180 : vector<8x256xf32>
    %c240_i32_48 = arith.constant 240 : i32
    %182 = tpu.dynamic_rotate %13 by %c240_i32_48 dim 1 : vector<1x256xf32>, i32 -> vector<1x256xf32>
    %183 = arith.mulf %182, %30 : vector<1x256xf32>
    %184 = vector.broadcast %21 : vector<8x1xf32> to vector<8x256xf32>
    %185 = vector.broadcast %183 : vector<1x256xf32> to vector<8x256xf32>
    %186 = arith.mulf %184, %185 : vector<8x256xf32>
    %187 = arith.addf %181, %186 : vector<8x256xf32>
    %c239_i32_49 = arith.constant 239 : i32
    %188 = tpu.dynamic_rotate %13 by %c239_i32_49 dim 1 : vector<1x256xf32>, i32 -> vector<1x256xf32>
    %189 = arith.mulf %188, %31 : vector<1x256xf32>
    %190 = vector.broadcast %22 : vector<8x1xf32> to vector<8x256xf32>
    %191 = vector.broadcast %189 : vector<1x256xf32> to vector<8x256xf32>
    %192 = arith.mulf %190, %191 : vector<8x256xf32>
    %193 = arith.addf %187, %192 : vector<8x256xf32>
    %c0_50 = arith.constant 0 : index
    %c0_51 = arith.constant 0 : index
    %194 = vector.load %arg4[%c0_50, %c0_51] : memref<24x2xf32, #tpu.memory_space<vmem>>, vector<8x1xf32>
    %cst_52 = arith.constant dense<0.000000e+00> : vector<8xf32>
    %195 = vector.multi_reduction <add>, %85, %cst_52 [1] : vector<8x256xf32> to vector<8xf32>
    %196 = vector.shape_cast %195 : vector<8xf32> to vector<8x1xf32>
    %197 = arith.addf %194, %196 : vector<8x1xf32>
    %c0_53 = arith.constant 0 : index
    %c0_54 = arith.constant 0 : index
    %198 = vector.load %arg4[%c0_53, %c0_54] : memref<24x2xf32, #tpu.memory_space<vmem>>, vector<8x1xf32>
    tpu.vector_store %arg4[%c0_53, %c0_54], %197 {strides = array<i32>} : memref<24x2xf32, #tpu.memory_space<vmem>>, vector<8x1xf32>,
    %c0_55 = arith.constant 0 : index
    %c1_56 = arith.constant 1 : index
    %199 = vector.load %arg4[%c0_55, %c1_56] : memref<24x2xf32, #tpu.memory_space<vmem>>, vector<8x1xf32>
    %200 = arith.mulf %85, %85 : vector<8x256xf32>
    %cst_57 = arith.constant dense<0.000000e+00> : vector<8xf32>
    %201 = vector.multi_reduction <add>, %200, %cst_57 [1] : vector<8x256xf32> to vector<8xf32>
    %202 = vector.shape_cast %201 : vector<8xf32> to vector<8x1xf32>
    %203 = arith.addf %199, %202 : vector<8x1xf32>
    %c0_58 = arith.constant 0 : index
    %c1_59 = arith.constant 1 : index
    %204 = vector.load %arg4[%c0_58, %c1_59] : memref<24x2xf32, #tpu.memory_space<vmem>>, vector<8x1xf32>
    tpu.vector_store %arg4[%c0_58, %c1_59], %203 {strides = array<i32>} : memref<24x2xf32, #tpu.memory_space<vmem>>, vector<8x1xf32>,
    %c8_60 = arith.constant 8 : index
    %c0_61 = arith.constant 0 : index
    %205 = vector.load %arg4[%c8_60, %c0_61] : memref<24x2xf32, #tpu.memory_space<vmem>>, vector<8x1xf32>
    %cst_62 = arith.constant dense<0.000000e+00> : vector<8xf32>
    %206 = vector.multi_reduction <add>, %139, %cst_62 [1] : vector<8x256xf32> to vector<8xf32>
    %207 = vector.shape_cast %206 : vector<8xf32> to vector<8x1xf32>
    %208 = arith.addf %205, %207 : vector<8x1xf32>
    %c8_63 = arith.constant 8 : index
    %c0_64 = arith.constant 0 : index
    %209 = vector.load %arg4[%c8_63, %c0_64] : memref<24x2xf32, #tpu.memory_space<vmem>>, vector<8x1xf32>
    tpu.vector_store %arg4[%c8_63, %c0_64], %208 {strides = array<i32>} : memref<24x2xf32, #tpu.memory_space<vmem>>, vector<8x1xf32>,
    %c8_65 = arith.constant 8 : index
    %c1_66 = arith.constant 1 : index
    %210 = vector.load %arg4[%c8_65, %c1_66] : memref<24x2xf32, #tpu.memory_space<vmem>>, vector<8x1xf32>
    %211 = arith.mulf %139, %139 : vector<8x256xf32>
    %cst_67 = arith.constant dense<0.000000e+00> : vector<8xf32>
    %212 = vector.multi_reduction <add>, %211, %cst_67 [1] : vector<8x256xf32> to vector<8xf32>
    %213 = vector.shape_cast %212 : vector<8xf32> to vector<8x1xf32>
    %214 = arith.addf %210, %213 : vector<8x1xf32>
    %c8_68 = arith.constant 8 : index
    %c1_69 = arith.constant 1 : index
    %215 = vector.load %arg4[%c8_68, %c1_69] : memref<24x2xf32, #tpu.memory_space<vmem>>, vector<8x1xf32>
    tpu.vector_store %arg4[%c8_68, %c1_69], %214 {strides = array<i32>} : memref<24x2xf32, #tpu.memory_space<vmem>>, vector<8x1xf32>,
    %c16 = arith.constant 16 : index
    %c0_70 = arith.constant 0 : index
    %216 = vector.load %arg4[%c16, %c0_70] : memref<24x2xf32, #tpu.memory_space<vmem>>, vector<8x1xf32>
    %cst_71 = arith.constant dense<0.000000e+00> : vector<8xf32>
    %217 = vector.multi_reduction <add>, %193, %cst_71 [1] : vector<8x256xf32> to vector<8xf32>
    %218 = vector.shape_cast %217 : vector<8xf32> to vector<8x1xf32>
    %219 = arith.addf %216, %218 : vector<8x1xf32>
    %c16_72 = arith.constant 16 : index
    %c0_73 = arith.constant 0 : index
    %220 = vector.load %arg4[%c16_72, %c0_73] : memref<24x2xf32, #tpu.memory_space<vmem>>, vector<8x1xf32>
    tpu.vector_store %arg4[%c16_72, %c0_73], %219 {strides = array<i32>} : memref<24x2xf32, #tpu.memory_space<vmem>>, vector<8x1xf32>,
    %c16_74 = arith.constant 16 : index
    %c1_75 = arith.constant 1 : index
    %221 = vector.load %arg4[%c16_74, %c1_75] : memref<24x2xf32, #tpu.memory_space<vmem>>, vector<8x1xf32>
    %222 = arith.mulf %193, %193 : vector<8x256xf32>
    %cst_76 = arith.constant dense<0.000000e+00> : vector<8xf32>
    %223 = vector.multi_reduction <add>, %222, %cst_76 [1] : vector<8x256xf32> to vector<8xf32>
    %224 = vector.shape_cast %223 : vector<8xf32> to vector<8x1xf32>
    %225 = arith.addf %221, %224 : vector<8x1xf32>
    %c16_77 = arith.constant 16 : index
    %c1_78 = arith.constant 1 : index
    %226 = vector.load %arg4[%c16_77, %c1_78] : memref<24x2xf32, #tpu.memory_space<vmem>>, vector<8x1xf32>
    tpu.vector_store %arg4[%c16_77, %c1_78], %225 {strides = array<i32>} : memref<24x2xf32, #tpu.memory_space<vmem>>, vector<8x1xf32>,
    return
  }
  func.func @transform_0(%arg0: i32) -> (i32, i32) {
    %c0_i32 = arith.constant 0 : i32
    %c0_i32_0 = arith.constant 0 : i32
    %c0_i32_1 = arith.constant 0 : i32
    return %c0_i32, %c0_i32_0 : i32, i32
  }
  func.func @transform_1(%arg0: i32) -> (i32, i32) {
    %c0_i32 = arith.constant 0 : i32
    %c0_i32_0 = arith.constant 0 : i32
    %c0_i32_1 = arith.constant 0 : i32
    return %c0_i32, %c0_i32_0 : i32, i32
  }
  func.func @transform_2(%arg0: i32) -> (i32, i32, i32) {
    %c0_i32 = arith.constant 0 : i32
    %c0_i32_0 = arith.constant 0 : i32
    %c0_i32_1 = arith.constant 0 : i32
    return %arg0, %c0_i32, %c0_i32_0 : i32, i32, i32
  }
  func.func @transform_3(%arg0: i32) -> (i32, i32) {
    %c0_i32 = arith.constant 0 : i32
    %c0_i32_0 = arith.constant 0 : i32
    %c0_i32_1 = arith.constant 0 : i32
    return %c0_i32, %c0_i32_0 : i32, i32
  }
}

</mosaic_0001>

<llo_original>
// kernel: tpu_custom_call.1
$region0: #{tpu_custom_call.1}
  #allocation0 [shape = 'u32[]', space=smem, size = 0x4, offset = 0x4, fixed_abs, tag = 'smem constant byte address 0x4 - core index']
  #allocation1 [shape = 'u32[144,128]{1,0:T(1,128)}', space=vmem, size = 0x12000, scoped, tag = 'internal scratch']
  %s0 = inlined_call_operand.vmem [shape: f32[8,9], index: 0, kind: input, shape index: {}]
  %s1 = inlined_call_operand.hbm [shape: f32[9,256], index: 1, kind: input, shape index: {}]
  %s2 = inlined_call_operand.vmem [shape: f32[2,3,256], index: 2, kind: input, shape index: {}]
  %s3 = inlined_call_operand.vmem [shape: f32[24,2], index: 3, kind: output, shape index: {}]
  %s4 = sld [smem:[#allocation0]]
  $region53: #{tpu_custom_call.1} parent=0
    _
  %s6 = ssub.s32 1, %s4
  %s7 = scalar_select 0, %s6, %s4
  $region1: #{tpu_custom_call.1} parent=0
    #allocation2 [shape = 'u8[16384]{0}', space=vmem, size = 0x4000, scoped, tag = 'input window, operand 1, single buffered']
    #allocation3 [shape = 's32[2]{0}', space=sflag, size = 0x8, scoped, tag = 'scoped memory for tpu_custom_call.1']
    %8 = vsyncpa [#allocation3], 0
    loop: start=0, step=1, limit=4
    $region2: #{tpu_custom_call.1} parent=1 // loop_pre_header
      _
    $region3: #{tpu_custom_call.1} parent=1 // loop_header
      %s10 = sphi 0, %s14
      %p11 = scmp.ge.s32.totalorder %s10, 4
      %s18 = sphi 0, %s18
      %s20 = sphi 0, %s18
      %s21 = sphi 0, %s20
      %s35 = sphi 0, %s21
      %s39 = sphi 0, %s39
      %s41 = sphi 0, %s39
      %s42 = sphi 0, %s41
      %s56 = sphi 0, %s42
      %s62 = sphi 0, %s64
      %s65 = sphi 0, %s62
      %s66 = sphi 0, %s65
      %s82 = sphi 0, %s66
      %s86 = sphi 0, %s86
      %s88 = sphi 0, %s86
      %s89 = sphi 0, %s88
      %s103 = sphi 0, %s89
    $region4: #{tpu_custom_call.1} parent=1 // loop_header_branch
      %13 = sbr.rel (%p11) target = $region8
    $region5: #{tpu_custom_call.1} parent=1 // loop_body
      %s15 = ssub.s32 %s10, 1
      %s16 = ssub.s32 %s10, 2
      %s17 = sadd.s32 %s10, 1
      %s19 = sadd.s32 %s18, 1
      %p22 = scmp.eq.s32.totalorder %s10, 1
      %p23 = scmp.ne.s32.totalorder %s18, %s20
      %p24 = scmp.eq.s32.totalorder %s10, 0
      %p25 = por %p23, %p24
      %p26 = scmp.ne.s32.totalorder %s18, %s20
      %p27 = scmp.eq.s32.totalorder %s15, 1
      %p28 = por %p26, %p27
      %p29 = scmp.ne.s32.totalorder %s20, %s21
      %p30 = scmp.eq.s32.totalorder %s15, 0
      %p31 = por %p29, %p30
      %p32 = scmp.ne.s32.totalorder %s20, %s21
      %p33 = scmp.eq.s32.totalorder %s16, 1
      %p34 = por %p32, %p33
      %p36 = scmp.ne.s32.totalorder %s21, %s35
      %p37 = scmp.eq.s32.totalorder %s16, 0
      %p38 = por %p36, %p37
      %s40 = sadd.s32 %s39, 1
      %p43 = scmp.eq.s32.totalorder %s10, 1
      %p44 = scmp.ne.s32.totalorder %s39, %s41
      %p45 = scmp.eq.s32.totalorder %s10, 0
      %p46 = por %p44, %p45
      %p47 = scmp.ne.s32.totalorder %s39, %s41
      %p48 = scmp.eq.s32.totalorder %s15, 1
      %p49 = por %p47, %p48
      %p50 = scmp.ne.s32.totalorder %s41, %s42
      %p51 = scmp.eq.s32.totalorder %s15, 0
      %p52 = por %p50, %p51
      %p53 = scmp.ne.s32.totalorder %s41, %s42
      %p54 = scmp.eq.s32.totalorder %s16, 1
      %p55 = por %p53, %p54
      %p57 = scmp.ne.s32.totalorder %s42, %s56
      %p58 = scmp.eq.s32.totalorder %s16, 0
      %p59 = por %p57, %p58
      %s60 = ssub.s32 %s10, %s17
      %p61 = scmp.eq.s32.totalorder %s60, 0
      %s63 = sadd.s32 %s62, 1
      %s64 = scalar_select %p61, %s62, %s63
      %p67 = pneg %p61
      %p68 = scmp.eq.s32.totalorder %s10, 1
      %p69 = por %p67, %p68
      %p70 = scmp.ne.s32.totalorder %s62, %s65
      %p71 = scmp.eq.s32.totalorder %s10, 0
      %p72 = por %p70, %p71
      %p73 = scmp.ne.s32.totalorder %s62, %s65
      %p74 = scmp.eq.s32.totalorder %s15, 1
      %p75 = por %p73, %p74
      %p76 = scmp.ne.s32.totalorder %s65, %s66
      %p77 = scmp.eq.s32.totalorder %s15, 0
      %p78 = por %p76, %p77
      %p79 = scmp.ne.s32.totalorder %s65, %s66
      %p80 = scmp.eq.s32.totalorder %s16, 1
      %p81 = por %p79, %p80
      %p83 = scmp.ne.s32.totalorder %s66, %s82
      %p84 = scmp.eq.s32.totalorder %s16, 0
      %p85 = por %p83, %p84
      %s87 = sadd.s32 %s86, 1
      %p90 = scmp.eq.s32.totalorder %s10, 1
      %p91 = scmp.ne.s32.totalorder %s86, %s88
      %p92 = scmp.eq.s32.totalorder %s10, 0
      %p93 = por %p91, %p92
      %p94 = scmp.ne.s32.totalorder %s86, %s88
      %p95 = scmp.eq.s32.totalorder %s15, 1
      %p96 = por %p94, %p95
      %p97 = scmp.ne.s32.totalorder %s88, %s89
      %p98 = scmp.eq.s32.totalorder %s15, 0
      %p99 = por %p97, %p98
      %p100 = scmp.ne.s32.totalorder %s88, %s89
      %p101 = scmp.eq.s32.totalorder %s16, 1
      %p102 = por %p100, %p101
      %p104 = scmp.ne.s32.totalorder %s89, %s103
      %p105 = scmp.eq.s32.totalorder %s16, 0
      %p106 = por %p104, %p105
      %p107 = scmp.le.s32.totalorder 1, %s10
      %p108 = scmp.lt.s32.totalorder %s10, 3
      %p109 = pnand %p107, %p108
      %p110 = pneg %p109
      // Predicated region
      $region9: #{tpu_custom_call.1} parent=5 // pred_check
        _
      $region10: #{tpu_custom_call.1} parent=5 // pred_check_branch
        %112 = sbr.rel (%p109) target = $region12
      $region11: #{tpu_custom_call.1} parent=5 // pred_region
        %s113 = ssub.s32 %s10, 1
        // Predicated region
        $region13: #{tpu_custom_call.1} parent=11 // pred_check
          %p114 = pneg %p31
        $region14: #{tpu_custom_call.1} parent=11 // pred_check_branch
          %116 = sbr.rel (%p114) target = $region16
        $region15: #{tpu_custom_call.1} parent=11 // pred_region
          _
        $region16: #{tpu_custom_call.1} parent=11 // pred_fallthru
          _
        // Predicated region
        $region17: #{tpu_custom_call.1} parent=11 // pred_check
          %p117 = pneg %p52
        $region18: #{tpu_custom_call.1} parent=11 // pred_check_branch
          %119 = sbr.rel (%p117) target = $region20
        $region19: #{tpu_custom_call.1} parent=11 // pred_region
          %s121 = ssub.s32 512, 512
          %122 = vsyncadd [#allocation3], %s121
          %s123 = sshll.u32 [#allocation2], 4
          %s124 = int_to_ptr.vmem [resolvable:$true] %s123
          %129 = dma.hbm_to_vmem [thread:$0]  %s1, 512, %s124, [#allocation3], 256, 256, 16
        $region20: #{tpu_custom_call.1} parent=11 // pred_fallthru
          _
      $region12: #{tpu_custom_call.1} parent=5 // pred_fallthru
        _
      %p130 = scmp.lt.s32.totalorder %s10, 2
      // Predicated region
      $region21: #{tpu_custom_call.1} parent=5 // pred_check
        %p131 = pneg %p130
      $region22: #{tpu_custom_call.1} parent=5 // pred_check_branch
        %133 = sbr.rel (%p131) target = $region24
      $region23: #{tpu_custom_call.1} parent=5 // pred_region
        // Predicated region
        $region25: #{tpu_custom_call.1} parent=23 // pred_check
          %p134 = pneg %p72
        $region26: #{tpu_custom_call.1} parent=23 // pred_check_branch
          %136 = sbr.rel (%p134) target = $region28
        $region27: #{tpu_custom_call.1} parent=23 // pred_region
          %p137 = scmp.lt.s32.totalorder %s10, 1
          %s138 = scalar_select %p137, %s10, 1
          %s139 = smul.addr %s138, 2
          %s140 = smul.addr %s139, 4
          %s141 = scalar_lea.vmem %s2, %s140
        $region28: #{tpu_custom_call.1} parent=23 // pred_fallthru
          _
      $region24: #{tpu_custom_call.1} parent=5 // pred_fallthru
        _
      %p142 = scmp.le.s32.totalorder 1, %s10
      %p143 = scmp.lt.s32.totalorder %s10, 3
      %p144 = pnand %p142, %p143
      %p145 = pneg %p144
      // Predicated region
      $region29: #{tpu_custom_call.1} parent=5 // pred_check
        _
      $region30: #{tpu_custom_call.1} parent=5 // pred_check_branch
        %147 = sbr.rel (%p144) target = $region32
      $region31: #{tpu_custom_call.1} parent=5 // pred_region
        %s148 = ssub.s32 %s10, 1
        // Predicated region
        $region33: #{tpu_custom_call.1} parent=31 // pred_check
          %p149 = pneg %p52
        $region34: #{tpu_custom_call.1} parent=31 // pred_check_branch
          %151 = sbr.rel (%p149) target = $region36
        $region35: #{tpu_custom_call.1} parent=31 // pred_region
          %152 = dma.done [#allocation3], 512
        $region36: #{tpu_custom_call.1} parent=31 // pred_fallthru
          _
        %p153 = pneg %p31
        %p154 = pneg %p28
        %p155 = pneg %p52
        %p156 = pneg %p49
        %p157 = scmp.lt.s32.totalorder %s15, 1
        %s158 = scalar_select %p157, %s15, 1
        %s159 = smul.addr %s158, 2
        %s160 = smul.addr %s159, 4
        %s161 = scalar_lea.vmem %s2, %s160
        %p162 = pneg %p78
        %p163 = pneg %p75
        %p164 = pneg %p99
        %p165 = pneg %p96
        %p166 = scmp.lt.s32.totalorder %s15, 1
        %s167 = scalar_select %p166, %s15, 1
        %s168 = smul.addr %s167, 2
        %s169 = smul.addr %s168, 4
        %s170 = scalar_lea.vmem %s2, %s169
        %p171 = scmp.eq.s32.totalorder %s15, 0
        // Predicated region
        $region37: #{tpu_custom_call.1} parent=31 // pred_check
          %p172 = pneg %p171
        $region38: #{tpu_custom_call.1} parent=31 // pred_check_branch
          %174 = sbr.rel (%p172) target = $region40
        $region39: #{tpu_custom_call.1} parent=31 // pred_region
          %vm175 = vcmask 15360
          %176 = vst.msk [vmem:[%s3] sm:$0xff] %vm175, 0.0
          %177 = vst.msk [vmem:[%s3 + $0x8] sm:$0xff] %vm175, 0.0
          %178 = vst.msk [vmem:[%s3 + $0x10] sm:$0xff] %vm175, 0.0
        $region40: #{tpu_custom_call.1} parent=31 // pred_fallthru
          _
        %v179 = vld [vmem:[%s170] sm:$0x77]
        %v180 = vadd.f32 %v179, 1e-07
        %v181 = vlog2.pop %v180
        %v182 = vmul.f32 %v181, 0.6931472
        %v184 = vrot.slane %v182, 5
        %v185 = vrot.slane %v184, 4
        %v187 = vsub.f32 %v182, %v185
        %v188 = vrot.slane %v182, 6
        %v189 = vrot.slane %v188, 4
        %v191 = vsub.f32 %v182, %v189
        %v192 = vld [vmem:[%s0] sm:$0xff]
        %v193 = vld [vmem:[#allocation2] ss:$8 sm:$0x3]
        %s194 = scalar_lea.vmem [#allocation2], 1
        %v195 = vld [vmem:[%s194] ss:$8 sm:$0x3]
        %s196 = scalar_lea.vmem [#allocation2], 2
        %v197 = vld [vmem:[%s196] ss:$8 sm:$0x3]
        %s198 = scalar_lea.vmem [#allocation2], 3
        %v199 = vld [vmem:[%s198] ss:$8 sm:$0x3]
        %s200 = scalar_lea.vmem [#allocation2], 4
        %v201 = vld [vmem:[%s200] ss:$8 sm:$0x3]
        %s202 = scalar_lea.vmem [#allocation2], 5
        %v203 = vld [vmem:[%s202] ss:$8 sm:$0x3]
        %s204 = scalar_lea.vmem [#allocation2], 6
        %v205 = vld [vmem:[%s204] ss:$8 sm:$0x3]
        %s206 = scalar_lea.vmem [#allocation2], 7
        %v207 = vld [vmem:[%s206] ss:$8 sm:$0x3]
        %s208 = scalar_lea.vmem [#allocation2], 16
        %v209 = vld [vmem:[%s208] ss:$8 sm:$0x3]
        %v211 = vlaneseq
        %v212 = vshrl.u32 %v211, 7
        %v213 = vsub.s32 0, %v212
        %v214 = vrot.slane %v187, %v213
        %v215 = vlaneseq
        %v216 = vshrl.u32 %v215, 7
        %v217 = vsub.s32 4, %v216
        %v218 = vrot.slane %v187, %v217
        %221 = vrot.lane.b32.xlu0 %v214, 17
        %v222 = vpop.permute.xlu0 %221
        %223 = vrot.lane.b32.xlu0 %v218, 17
        %v224 = vpop.permute.xlu0 %223
        %v225 = vlaneseq
        %v226 = vand.u32 %v225, 127
        %vm227 = vcmp.lt.s32.totalorder %v226, 17
        %v228 = vsel %vm227, %v222, %v224
        %v229 = vsel %vm227, %v224, %v222
        %v231 = vlaneseq
        %v232 = vshrl.u32 %v231, 7
        %v233 = vsub.s32 0, %v232
        %v234 = vrot.slane %v193, %v233
        %v235 = vlaneseq
        %v236 = vshrl.u32 %v235, 7
        %v237 = vsub.s32 1, %v236
        %v238 = vrot.slane %v193, %v237
        %v241 = vmul.f32 %v229, %v234
        %v242 = vmul.f32 %v228, %v238
        %244 = vset.pattern.permute.xlu0 0
        %245 = vperm.xlu0 %244, %v192
        %v246 = vpop.permute.xlu0 %245
        %v248 = vlaneseq
        %v249 = vshrl.u32 %v248, 7
        %v250 = vsub.s32 0, %v249
        %v251 = vrot.slane %v241, %v250
        %v252 = vlaneseq
        %v253 = vshrl.u32 %v252, 7
        %v254 = vsub.s32 0, %v253
        %v255 = vrot.slane %v242, %v254
        %v256 = vmul.f32 %v246, %v251
        %v257 = vmul.f32 %v246, %v255
        %v258 = vadd.f32 %v256, 0.0
        %v259 = vadd.f32 %v257, 0.0
        %260 = vrot.lane.b32.xlu0 %v214, 16
        %v261 = vpop.permute.xlu0 %260
        %262 = vrot.lane.b32.xlu0 %v218, 16
        %v263 = vpop.permute.xlu0 %262
        %vm264 = vcmp.lt.s32.totalorder %v226, 16
        %v265 = vsel %vm264, %v261, %v263
        %v266 = vsel %vm264, %v263, %v261
        %v268 = vlaneseq
        %v269 = vshrl.u32 %v268, 7
        %v270 = vsub.s32 0, %v269
        %v271 = vrot.slane %v195, %v270
        %v272 = vlaneseq
        %v273 = vshrl.u32 %v272, 7
        %v274 = vsub.s32 1, %v273
        %v275 = vrot.slane %v195, %v274
        %v278 = vmul.f32 %v266, %v271
        %v279 = vmul.f32 %v265, %v275
        %280 = vset.pattern.permute.xlu0 1
        %281 = vperm.xlu0 %280, %v192
        %v282 = vpop.permute.xlu0 %281
        %v284 = vlaneseq
        %v285 = vshrl.u32 %v284, 7
        %v286 = vsub.s32 0, %v285
        %v287 = vrot.slane %v278, %v286
        %v288 = vlaneseq
        %v289 = vshrl.u32 %v288, 7
        %v290 = vsub.s32 0, %v289
        %v291 = vrot.slane %v279, %v290
        %v292 = vmul.f32 %v282, %v287
        %v293 = vmul.f32 %v282, %v291
        %v294 = vadd.f32 %v258, %v292
        %v295 = vadd.f32 %v259, %v293
        %296 = vrot.lane.b32.xlu0 %v214, 15
        %v297 = vpop.permute.xlu0 %296
        %298 = vrot.lane.b32.xlu0 %v218, 15
        %v299 = vpop.permute.xlu0 %298
        %vm300 = vcmp.lt.s32.totalorder %v226, 15
        %v301 = vsel %vm300, %v297, %v299
        %v302 = vsel %vm300, %v299, %v297
        %v304 = vlaneseq
        %v305 = vshrl.u32 %v304, 7
        %v306 = vsub.s32 0, %v305
        %v307 = vrot.slane %v197, %v306
        %v308 = vlaneseq
        %v309 = vshrl.u32 %v308, 7
        %v310 = vsub.s32 1, %v309
        %v311 = vrot.slane %v197, %v310
        %v314 = vmul.f32 %v302, %v307
        %v315 = vmul.f32 %v301, %v311
        %316 = vset.pattern.permute.xlu0 2
        %317 = vperm.xlu0 %316, %v192
        %v318 = vpop.permute.xlu0 %317
        %v320 = vlaneseq
        %v321 = vshrl.u32 %v320, 7
        %v322 = vsub.s32 0, %v321
        %v323 = vrot.slane %v314, %v322
        %v324 = vlaneseq
        %v325 = vshrl.u32 %v324, 7
        %v326 = vsub.s32 0, %v325
        %v327 = vrot.slane %v315, %v326
        %v328 = vmul.f32 %v318, %v323
        %v329 = vmul.f32 %v318, %v327
        %v330 = vadd.f32 %v294, %v328
        %v331 = vadd.f32 %v295, %v329
        %332 = vrot.lane.b32.xlu0 %v214, 1
        %v333 = vpop.permute.xlu0 %332
        %334 = vrot.lane.b32.xlu0 %v218, 1
        %v335 = vpop.permute.xlu0 %334
        %vm336 = vcmp.lt.s32.totalorder %v226, 1
        %v337 = vsel %vm336, %v333, %v335
        %v338 = vsel %vm336, %v335, %v333
        %v340 = vlaneseq
        %v341 = vshrl.u32 %v340, 7
        %v342 = vsub.s32 0, %v341
        %v343 = vrot.slane %v199, %v342
        %v344 = vlaneseq
        %v345 = vshrl.u32 %v344, 7
        %v346 = vsub.s32 1, %v345
        %v347 = vrot.slane %v199, %v346
        %v350 = vmul.f32 %v338, %v343
        %v351 = vmul.f32 %v337, %v347
        %352 = vset.pattern.permute.xlu0 3
        %353 = vperm.xlu0 %352, %v192
        %v354 = vpop.permute.xlu0 %353
        %v356 = vlaneseq
        %v357 = vshrl.u32 %v356, 7
        %v358 = vsub.s32 0, %v357
        %v359 = vrot.slane %v350, %v358
        %v360 = vlaneseq
        %v361 = vshrl.u32 %v360, 7
        %v362 = vsub.s32 0, %v361
        %v363 = vrot.slane %v351, %v362
        %v364 = vmul.f32 %v354, %v359
        %v365 = vmul.f32 %v354, %v363
        %v366 = vadd.f32 %v330, %v364
        %v367 = vadd.f32 %v331, %v365
        %v370 = vunpack.c.l.s4 286326784
        %v371 = vunpack.c.0.s8 %v370
        %v372 = vlaneseq
        %v373 = vshrl.u32 %v372, 7
        %v374 = vsub.s32 %v371, %v373
        %v375 = vrot.slane %v201, %v374
        %v377 = vmul.f32 %v187, %v375
        %378 = vset.pattern.permute.xlu0 4
        %379 = vperm.xlu0 %378, %v192
        %v380 = vpop.permute.xlu0 %379
        %v383 = vlaneseq
        %v384 = vshrl.u32 %v383, 7
        %v385 = vsub.s32 0, %v384
        %v386 = vrot.slane %v377, %v385
        %v387 = vlaneseq
        %v388 = vshrl.u32 %v387, 7
        %v389 = vsub.s32 4, %v388
        %v390 = vrot.slane %v377, %v389
        %v393 = vlaneseq
        %v394 = vshrl.u32 %v393, 7
        %v395 = vsub.s32 0, %v394
        %v396 = vrot.slane %v386, %v395
        %v397 = vlaneseq
        %v398 = vshrl.u32 %v397, 7
        %v399 = vsub.s32 0, %v398
        %v400 = vrot.slane %v390, %v399
        %v401 = vmul.f32 %v380, %v396
        %v402 = vmul.f32 %v380, %v400
        %v403 = vadd.f32 %v366, %v401
        %v404 = vadd.f32 %v367, %v402
        %405 = vrot.lane.b32.xlu0 %v214, 127
        %v406 = vpop.permute.xlu0 %405
        %407 = vrot.lane.b32.xlu0 %v218, 127
        %v408 = vpop.permute.xlu0 %407
        %vm409 = vcmp.lt.s32.totalorder %v226, 127
        %v410 = vsel %vm409, %v406, %v408
        %v411 = vsel %vm409, %v408, %v406
        %v413 = vlaneseq
        %v414 = vshrl.u32 %v413, 7
        %v415 = vsub.s32 0, %v414
        %v416 = vrot.slane %v203, %v415
        %v417 = vlaneseq
        %v418 = vshrl.u32 %v417, 7
        %v419 = vsub.s32 1, %v418
        %v420 = vrot.slane %v203, %v419
        %v423 = vmul.f32 %v410, %v416
        %v424 = vmul.f32 %v411, %v420
        %425 = vset.pattern.permute.xlu0 5
        %426 = vperm.xlu0 %425, %v192
        %v427 = vpop.permute.xlu0 %426
        %v429 = vlaneseq
        %v430 = vshrl.u32 %v429, 7
        %v431 = vsub.s32 0, %v430
        %v432 = vrot.slane %v423, %v431
        %v433 = vlaneseq
        %v434 = vshrl.u32 %v433, 7
        %v435 = vsub.s32 0, %v434
        %v436 = vrot.slane %v424, %v435
        %v437 = vmul.f32 %v427, %v432
        %v438 = vmul.f32 %v427, %v436
        %v439 = vadd.f32 %v403, %v437
        %v440 = vadd.f32 %v404, %v438
        %441 = vrot.lane.b32.xlu0 %v214, 113
        %v442 = vpop.permute.xlu0 %441
        %443 = vrot.lane.b32.xlu0 %v218, 113
        %v444 = vpop.permute.xlu0 %443
        %vm445 = vcmp.lt.s32.totalorder %v226, 113
        %v446 = vsel %vm445, %v442, %v444
        %v447 = vsel %vm445, %v444, %v442
        %v449 = vlaneseq
        %v450 = vshrl.u32 %v449, 7
        %v451 = vsub.s32 0, %v450
        %v452 = vrot.slane %v205, %v451
        %v453 = vlaneseq
        %v454 = vshrl.u32 %v453, 7
        %v455 = vsub.s32 1, %v454
        %v456 = vrot.slane %v205, %v455
        %v459 = vmul.f32 %v446, %v452
        %v460 = vmul.f32 %v447, %v456
        %461 = vset.pattern.permute.xlu0 6
        %462 = vperm.xlu0 %461, %v192
        %v463 = vpop.permute.xlu0 %462
        %v465 = vlaneseq
        %v466 = vshrl.u32 %v465, 7
        %v467 = vsub.s32 0, %v466
        %v468 = vrot.slane %v459, %v467
        %v469 = vlaneseq
        %v470 = vshrl.u32 %v469, 7
        %v471 = vsub.s32 0, %v470
        %v472 = vrot.slane %v460, %v471
        %v473 = vmul.f32 %v463, %v468
        %v474 = vmul.f32 %v463, %v472
        %v475 = vadd.f32 %v439, %v473
        %v476 = vadd.f32 %v440, %v474
        %477 = vrot.lane.b32.xlu0 %v214, 112
        %v478 = vpop.permute.xlu0 %477
        %479 = vrot.lane.b32.xlu0 %v218, 112
        %v480 = vpop.permute.xlu0 %479
        %vm481 = vcmp.lt.s32.totalorder %v226, 112
        %v482 = vsel %vm481, %v478, %v480
        %v483 = vsel %vm481, %v480, %v478
        %v485 = vlaneseq
        %v486 = vshrl.u32 %v485, 7
        %v487 = vsub.s32 0, %v486
        %v488 = vrot.slane %v207, %v487
        %v489 = vlaneseq
        %v490 = vshrl.u32 %v489, 7
        %v491 = vsub.s32 1, %v490
        %v492 = vrot.slane %v207, %v491
        %v495 = vmul.f32 %v482, %v488
        %v496 = vmul.f32 %v483, %v492
        %497 = vset.pattern.permute.xlu0 7
        %498 = vperm.xlu0 %497, %v192
        %v499 = vpop.permute.xlu0 %498
        %v501 = vlaneseq
        %v502 = vshrl.u32 %v501, 7
        %v503 = vsub.s32 0, %v502
        %v504 = vrot.slane %v495, %v503
        %v505 = vlaneseq
        %v506 = vshrl.u32 %v505, 7
        %v507 = vsub.s32 0, %v506
        %v508 = vrot.slane %v496, %v507
        %v509 = vmul.f32 %v499, %v504
        %v510 = vmul.f32 %v499, %v508
        %v511 = vadd.f32 %v475, %v509
        %v512 = vadd.f32 %v476, %v510
        %513 = vrot.lane.b32.xlu0 %v214, 111
        %v514 = vpop.permute.xlu0 %513
        %515 = vrot.lane.b32.xlu0 %v218, 111
        %v516 = vpop.permute.xlu0 %515
        %vm517 = vcmp.lt.s32.totalorder %v226, 111
        %v518 = vsel %vm517, %v514, %v516
        %v519 = vsel %vm517, %v516, %v514
        %v521 = vlaneseq
        %v522 = vshrl.u32 %v521, 7
        %v523 = vsub.s32 0, %v522
        %v524 = vrot.slane %v209, %v523
        %v525 = vlaneseq
        %v526 = vshrl.u32 %v525, 7
        %v527 = vsub.s32 1, %v526
        %v528 = vrot.slane %v209, %v527
        %v531 = vmul.f32 %v518, %v524
        %v532 = vmul.f32 %v519, %v528
        %533 = vset.pattern.permute.xlu0 8
        %534 = vperm.xlu0 %533, %v192
        %v535 = vpop.permute.xlu0 %534
        %v537 = vlaneseq
        %v538 = vshrl.u32 %v537, 7
        %v539 = vsub.s32 0, %v538
        %v540 = vrot.slane %v531, %v539
        %v541 = vlaneseq
        %v542 = vshrl.u32 %v541, 7
        %v543 = vsub.s32 0, %v542
        %v544 = vrot.slane %v532, %v543
        %v545 = vmul.f32 %v535, %v540
        %v546 = vmul.f32 %v535, %v544
        %v547 = vadd.f32 %v511, %v545
        %v548 = vadd.f32 %v512, %v546
        %v549 = vlaneseq
        %v550 = vshrl.u32 %v549, 7
        %v551 = vsub.s32 1, %v550
        %v552 = vrot.slane %v187, %v551
        %v553 = vlaneseq
        %v554 = vshrl.u32 %v553, 7
        %v555 = vsub.s32 5, %v554
        %v556 = vrot.slane %v187, %v555
        %559 = vrot.lane.b32.xlu0 %v552, 17
        %v560 = vpop.permute.xlu0 %559
        %561 = vrot.lane.b32.xlu0 %v556, 17
        %v562 = vpop.permute.xlu0 %561
        %v563 = vsel %vm227, %v560, %v562
        %v564 = vsel %vm227, %v562, %v560
        %v565 = vmul.f32 %v564, %v234
        %v566 = vmul.f32 %v563, %v238
        %v567 = vlaneseq
        %v568 = vshrl.u32 %v567, 7
        %v569 = vsub.s32 0, %v568
        %v570 = vrot.slane %v565, %v569
        %v571 = vlaneseq
        %v572 = vshrl.u32 %v571, 7
        %v573 = vsub.s32 0, %v572
        %v574 = vrot.slane %v566, %v573
        %v575 = vmul.f32 %v246, %v570
        %v576 = vmul.f32 %v246, %v574
        %v577 = vadd.f32 %v575, 0.0
        %v578 = vadd.f32 %v576, 0.0
        %579 = vrot.lane.b32.xlu0 %v552, 16
        %v580 = vpop.permute.xlu0 %579
        %581 = vrot.lane.b32.xlu0 %v556, 16
        %v582 = vpop.permute.xlu0 %581
        %v583 = vsel %vm264, %v580, %v582
        %v584 = vsel %vm264, %v582, %v580
        %v585 = vmul.f32 %v584, %v271
        %v586 = vmul.f32 %v583, %v275
        %v587 = vlaneseq
        %v588 = vshrl.u32 %v587, 7
        %v589 = vsub.s32 0, %v588
        %v590 = vrot.slane %v585, %v589
        %v591 = vlaneseq
        %v592 = vshrl.u32 %v591, 7
        %v593 = vsub.s32 0, %v592
        %v594 = vrot.slane %v586, %v593
        %v595 = vmul.f32 %v282, %v590
        %v596 = vmul.f32 %v282, %v594
        %v597 = vadd.f32 %v577, %v595
        %v598 = vadd.f32 %v578, %v596
        %599 = vrot.lane.b32.xlu0 %v552, 15
        %v600 = vpop.permute.xlu0 %599
        %601 = vrot.lane.b32.xlu0 %v556, 15
        %v602 = vpop.permute.xlu0 %601
        %v603 = vsel %vm300, %v600, %v602
        %v604 = vsel %vm300, %v602, %v600
        %v605 = vmul.f32 %v604, %v307
        %v606 = vmul.f32 %v603, %v311
        %v607 = vlaneseq
        %v608 = vshrl.u32 %v607, 7
        %v609 = vsub.s32 0, %v608
        %v610 = vrot.slane %v605, %v609
        %v611 = vlaneseq
        %v612 = vshrl.u32 %v611, 7
        %v613 = vsub.s32 0, %v612
        %v614 = vrot.slane %v606, %v613
        %v615 = vmul.f32 %v318, %v610
        %v616 = vmul.f32 %v318, %v614
        %v617 = vadd.f32 %v597, %v615
        %v618 = vadd.f32 %v598, %v616
        %619 = vrot.lane.b32.xlu0 %v552, 1
        %v620 = vpop.permute.xlu0 %619
        %621 = vrot.lane.b32.xlu0 %v556, 1
        %v622 = vpop.permute.xlu0 %621
        %v623 = vsel %vm336, %v620, %v622
        %v624 = vsel %vm336, %v622, %v620
        %v625 = vmul.f32 %v624, %v343
        %v626 = vmul.f32 %v623, %v347
        %v627 = vlaneseq
        %v628 = vshrl.u32 %v627, 7
        %v629 = vsub.s32 0, %v628
        %v630 = vrot.slane %v625, %v629
        %v631 = vlaneseq
        %v632 = vshrl.u32 %v631, 7
        %v633 = vsub.s32 0, %v632
        %v634 = vrot.slane %v626, %v633
        %v635 = vmul.f32 %v354, %v630
        %v636 = vmul.f32 %v354, %v634
        %v637 = vadd.f32 %v617, %v635
        %v638 = vadd.f32 %v618, %v636
        %v639 = vlaneseq
        %v640 = vshrl.u32 %v639, 7
        %v641 = vsub.s32 1, %v640
        %v642 = vrot.slane %v377, %v641
        %v643 = vlaneseq
        %v644 = vshrl.u32 %v643, 7
        %v645 = vsub.s32 5, %v644
        %v646 = vrot.slane %v377, %v645
        %v649 = vlaneseq
        %v650 = vshrl.u32 %v649, 7
        %v651 = vsub.s32 1, %v650
        %v652 = vrot.slane %v642, %v651
        %v653 = vlaneseq
        %v654 = vshrl.u32 %v653, 7
        %v655 = vsub.s32 1, %v654
        %v656 = vrot.slane %v646, %v655
        %v657 = vmul.f32 %v380, %v652
        %v658 = vmul.f32 %v380, %v656
        %v659 = vadd.f32 %v637, %v657
        %v660 = vadd.f32 %v638, %v658
        %661 = vrot.lane.b32.xlu0 %v552, 127
        %v662 = vpop.permute.xlu0 %661
        %663 = vrot.lane.b32.xlu0 %v556, 127
        %v664 = vpop.permute.xlu0 %663
        %v665 = vsel %vm409, %v662, %v664
        %v666 = vsel %vm409, %v664, %v662
        %v667 = vmul.f32 %v665, %v416
        %v668 = vmul.f32 %v666, %v420
        %v669 = vlaneseq
        %v670 = vshrl.u32 %v669, 7
        %v671 = vsub.s32 0, %v670
        %v672 = vrot.slane %v667, %v671
        %v673 = vlaneseq
        %v674 = vshrl.u32 %v673, 7
        %v675 = vsub.s32 0, %v674
        %v676 = vrot.slane %v668, %v675
        %v677 = vmul.f32 %v427, %v672
        %v678 = vmul.f32 %v427, %v676
        %v679 = vadd.f32 %v659, %v677
        %v680 = vadd.f32 %v660, %v678
        %681 = vrot.lane.b32.xlu0 %v552, 113
        %v682 = vpop.permute.xlu0 %681
        %683 = vrot.lane.b32.xlu0 %v556, 113
        %v684 = vpop.permute.xlu0 %683
        %v685 = vsel %vm445, %v682, %v684
        %v686 = vsel %vm445, %v684, %v682
        %v687 = vmul.f32 %v685, %v452
        %v688 = vmul.f32 %v686, %v456
        %v689 = vlaneseq
        %v690 = vshrl.u32 %v689, 7
        %v691 = vsub.s32 0, %v690
        %v692 = vrot.slane %v687, %v691
        %v693 = vlaneseq
        %v694 = vshrl.u32 %v693, 7
        %v695 = vsub.s32 0, %v694
        %v696 = vrot.slane %v688, %v695
        %v697 = vmul.f32 %v463, %v692
        %v698 = vmul.f32 %v463, %v696
        %v699 = vadd.f32 %v679, %v697
        %v700 = vadd.f32 %v680, %v698
        %701 = vrot.lane.b32.xlu0 %v552, 112
        %v702 = vpop.permute.xlu0 %701
        %703 = vrot.lane.b32.xlu0 %v556, 112
        %v704 = vpop.permute.xlu0 %703
        %v705 = vsel %vm481, %v702, %v704
        %v706 = vsel %vm481, %v704, %v702
        %v707 = vmul.f32 %v705, %v488
        %v708 = vmul.f32 %v706, %v492
        %v709 = vlaneseq
        %v710 = vshrl.u32 %v709, 7
        %v711 = vsub.s32 0, %v710
        %v712 = vrot.slane %v707, %v711
        %v713 = vlaneseq
        %v714 = vshrl.u32 %v713, 7
        %v715 = vsub.s32 0, %v714
        %v716 = vrot.slane %v708, %v715
        %v717 = vmul.f32 %v499, %v712
        %v718 = vmul.f32 %v499, %v716
        %v719 = vadd.f32 %v699, %v717
        %v720 = vadd.f32 %v700, %v718
        %721 = vrot.lane.b32.xlu0 %v552, 111
        %v722 = vpop.permute.xlu0 %721
        %723 = vrot.lane.b32.xlu0 %v556, 111
        %v724 = vpop.permute.xlu0 %723
        %v725 = vsel %vm517, %v722, %v724
        %v726 = vsel %vm517, %v724, %v722
        %v727 = vmul.f32 %v725, %v524
        %v728 = vmul.f32 %v726, %v528
        %v729 = vlaneseq
        %v730 = vshrl.u32 %v729, 7
        %v731 = vsub.s32 0, %v730
        %v732 = vrot.slane %v727, %v731
        %v733 = vlaneseq
        %v734 = vshrl.u32 %v733, 7
        %v735 = vsub.s32 0, %v734
        %v736 = vrot.slane %v728, %v735
        %v737 = vmul.f32 %v535, %v732
        %v738 = vmul.f32 %v535, %v736
        %v739 = vadd.f32 %v719, %v737
        %v740 = vadd.f32 %v720, %v738
        %v742 = vlaneseq
        %v743 = vshrl.u32 %v742, 7
        %v744 = vsub.s32 0, %v743
        %v745 = vrot.slane %v191, %v744
        %v746 = vlaneseq
        %v747 = vshrl.u32 %v746, 7
        %v748 = vsub.s32 4, %v747
        %v749 = vrot.slane %v191, %v748
        %752 = vrot.lane.b32.xlu0 %v745, 17
        %v753 = vpop.permute.xlu0 %752
        %754 = vrot.lane.b32.xlu0 %v749, 17
        %v755 = vpop.permute.xlu0 %754
        %v756 = vsel %vm227, %v753, %v755
        %v757 = vsel %vm227, %v755, %v753
        %v758 = vmul.f32 %v757, %v234
        %v759 = vmul.f32 %v756, %v238
        %v760 = vlaneseq
        %v761 = vshrl.u32 %v760, 7
        %v762 = vsub.s32 0, %v761
        %v763 = vrot.slane %v758, %v762
        %v764 = vlaneseq
        %v765 = vshrl.u32 %v764, 7
        %v766 = vsub.s32 0, %v765
        %v767 = vrot.slane %v759, %v766
        %v768 = vmul.f32 %v246, %v763
        %v769 = vmul.f32 %v246, %v767
        %v770 = vadd.f32 %v768, 0.0
        %v771 = vadd.f32 %v769, 0.0
        %772 = vrot.lane.b32.xlu0 %v745, 16
        %v773 = vpop.permute.xlu0 %772
        %774 = vrot.lane.b32.xlu0 %v749, 16
        %v775 = vpop.permute.xlu0 %774
        %v776 = vsel %vm264, %v773, %v775
        %v777 = vsel %vm264, %v775, %v773
        %v778 = vmul.f32 %v777, %v271
        %v779 = vmul.f32 %v776, %v275
        %v780 = vlaneseq
        %v781 = vshrl.u32 %v780, 7
        %v782 = vsub.s32 0, %v781
        %v783 = vrot.slane %v778, %v782
        %v784 = vlaneseq
        %v785 = vshrl.u32 %v784, 7
        %v786 = vsub.s32 0, %v785
        %v787 = vrot.slane %v779, %v786
        %v788 = vmul.f32 %v282, %v783
        %v789 = vmul.f32 %v282, %v787
        %v790 = vadd.f32 %v770, %v788
        %v791 = vadd.f32 %v771, %v789
        %792 = vrot.lane.b32.xlu0 %v745, 15
        %v793 = vpop.permute.xlu0 %792
        %794 = vrot.lane.b32.xlu0 %v749, 15
        %v795 = vpop.permute.xlu0 %794
        %v796 = vsel %vm300, %v793, %v795
        %v797 = vsel %vm300, %v795, %v793
        %v798 = vmul.f32 %v797, %v307
        %v799 = vmul.f32 %v796, %v311
        %v800 = vlaneseq
        %v801 = vshrl.u32 %v800, 7
        %v802 = vsub.s32 0, %v801
        %v803 = vrot.slane %v798, %v802
        %v804 = vlaneseq
        %v805 = vshrl.u32 %v804, 7
        %v806 = vsub.s32 0, %v805
        %v807 = vrot.slane %v799, %v806
        %v808 = vmul.f32 %v318, %v803
        %v809 = vmul.f32 %v318, %v807
        %v810 = vadd.f32 %v790, %v808
        %v811 = vadd.f32 %v791, %v809
        %812 = vrot.lane.b32.xlu0 %v745, 1
        %v813 = vpop.permute.xlu0 %812
        %814 = vrot.lane.b32.xlu0 %v749, 1
        %v815 = vpop.permute.xlu0 %814
        %v816 = vsel %vm336, %v813, %v815
        %v817 = vsel %vm336, %v815, %v813
        %v818 = vmul.f32 %v817, %v343
        %v819 = vmul.f32 %v816, %v347
        %v820 = vlaneseq
        %v821 = vshrl.u32 %v820, 7
        %v822 = vsub.s32 0, %v821
        %v823 = vrot.slane %v818, %v822
        %v824 = vlaneseq
        %v825 = vshrl.u32 %v824, 7
        %v826 = vsub.s32 0, %v825
        %v827 = vrot.slane %v819, %v826
        %v828 = vmul.f32 %v354, %v823
        %v829 = vmul.f32 %v354, %v827
        %v830 = vadd.f32 %v810, %v828
        %v831 = vadd.f32 %v811, %v829
        %v832 = vmul.f32 %v191, %v375
        %v834 = vlaneseq
        %v835 = vshrl.u32 %v834, 7
        %v836 = vsub.s32 0, %v835
        %v837 = vrot.slane %v832, %v836
        %v838 = vlaneseq
        %v839 = vshrl.u32 %v838, 7
        %v840 = vsub.s32 4, %v839
        %v841 = vrot.slane %v832, %v840
        %v844 = vlaneseq
        %v845 = vshrl.u32 %v844, 7
        %v846 = vsub.s32 0, %v845
        %v847 = vrot.slane %v837, %v846
        %v848 = vlaneseq
        %v849 = vshrl.u32 %v848, 7
        %v850 = vsub.s32 0, %v849
        %v851 = vrot.slane %v841, %v850
        %v852 = vmul.f32 %v380, %v847
        %v853 = vmul.f32 %v380, %v851
        %v854 = vadd.f32 %v830, %v852
        %v855 = vadd.f32 %v831, %v853
        %856 = vrot.lane.b32.xlu0 %v745, 127
        %v857 = vpop.permute.xlu0 %856
        %858 = vrot.lane.b32.xlu0 %v749, 127
        %v859 = vpop.permute.xlu0 %858
        %v860 = vsel %vm409, %v857, %v859
        %v861 = vsel %vm409, %v859, %v857
        %v862 = vmul.f32 %v860, %v416
        %v863 = vmul.f32 %v861, %v420
        %v864 = vlaneseq
        %v865 = vshrl.u32 %v864, 7
        %v866 = vsub.s32 0, %v865
        %v867 = vrot.slane %v862, %v866
        %v868 = vlaneseq
        %v869 = vshrl.u32 %v868, 7
        %v870 = vsub.s32 0, %v869
        %v871 = vrot.slane %v863, %v870
        %v872 = vmul.f32 %v427, %v867
        %v873 = vmul.f32 %v427, %v871
        %v874 = vadd.f32 %v854, %v872
        %v875 = vadd.f32 %v855, %v873
        %876 = vrot.lane.b32.xlu0 %v745, 113
        %v877 = vpop.permute.xlu0 %876
        %878 = vrot.lane.b32.xlu0 %v749, 113
        %v879 = vpop.permute.xlu0 %878
        %v880 = vsel %vm445, %v877, %v879
        %v881 = vsel %vm445, %v879, %v877
        %v882 = vmul.f32 %v880, %v452
        %v883 = vmul.f32 %v881, %v456
        %v884 = vlaneseq
        %v885 = vshrl.u32 %v884, 7
        %v886 = vsub.s32 0, %v885
        %v887 = vrot.slane %v882, %v886
        %v888 = vlaneseq
        %v889 = vshrl.u32 %v888, 7
        %v890 = vsub.s32 0, %v889
        %v891 = vrot.slane %v883, %v890
        %v892 = vmul.f32 %v463, %v887
        %v893 = vmul.f32 %v463, %v891
        %v894 = vadd.f32 %v874, %v892
        %v895 = vadd.f32 %v875, %v893
        %896 = vrot.lane.b32.xlu0 %v745, 112
        %v897 = vpop.permute.xlu0 %896
        %898 = vrot.lane.b32.xlu0 %v749, 112
        %v899 = vpop.permute.xlu0 %898
        %v900 = vsel %vm481, %v897, %v899
        %v901 = vsel %vm481, %v899, %v897
        %v902 = vmul.f32 %v900, %v488
        %v903 = vmul.f32 %v901, %v492
        %v904 = vlaneseq
        %v905 = vshrl.u32 %v904, 7
        %v906 = vsub.s32 0, %v905
        %v907 = vrot.slane %v902, %v906
        %v908 = vlaneseq
        %v909 = vshrl.u32 %v908, 7
        %v910 = vsub.s32 0, %v909
        %v911 = vrot.slane %v903, %v910
        %v912 = vmul.f32 %v499, %v907
        %v913 = vmul.f32 %v499, %v911
        %v914 = vadd.f32 %v894, %v912
        %v915 = vadd.f32 %v895, %v913
        %916 = vrot.lane.b32.xlu0 %v745, 111
        %v917 = vpop.permute.xlu0 %916
        %918 = vrot.lane.b32.xlu0 %v749, 111
        %v919 = vpop.permute.xlu0 %918
        %v920 = vsel %vm517, %v917, %v919
        %v921 = vsel %vm517, %v919, %v917
        %v922 = vmul.f32 %v920, %v524
        %v923 = vmul.f32 %v921, %v528
        %v924 = vlaneseq
        %v925 = vshrl.u32 %v924, 7
        %v926 = vsub.s32 0, %v925
        %v927 = vrot.slane %v922, %v926
        %v928 = vlaneseq
        %v929 = vshrl.u32 %v928, 7
        %v930 = vsub.s32 0, %v929
        %v931 = vrot.slane %v923, %v930
        %v932 = vmul.f32 %v535, %v927
        %v933 = vmul.f32 %v535, %v931
        %v934 = vadd.f32 %v914, %v932
        %v935 = vadd.f32 %v915, %v933
        %v936 = vld [vmem:[%s3] sm:$0xff]
        %v937 = vadd.f32 %v547, %v548
        %938 = vadd.xlane.f32.xlu0 %v937
        %v939 = vpop.xlane.xlu0 %938
        %v940 = vadd.f32 %v936, %v939
        %vm941 = vcmask 7168
        %942 = vst.msk [vmem:[%s3] sm:$0xff] %vm941, %v940
        %v943 = vld [vmem:[%s3] sm:$0xff]
        %v944 = vmul.f32 %v547, %v547
        %v945 = vmul.f32 %v548, %v548
        %v946 = vadd.f32 %v944, %v945
        %947 = vadd.xlane.f32.xlu0 %v946
        %v948 = vpop.xlane.xlu0 %947
        %v949 = vadd.f32 %v943, %v948
        %vm950 = vcmask 15368
        %951 = vst.msk [vmem:[%s3] sm:$0xff] %vm950, %v949
        %v952 = vld [vmem:[%s3 + $0x8] sm:$0xff]
        %v953 = vadd.f32 %v739, %v740
        %954 = vadd.xlane.f32.xlu0 %v953
        %v955 = vpop.xlane.xlu0 %954
        %v956 = vadd.f32 %v952, %v955
        %957 = vst.msk [vmem:[%s3 + $0x8] sm:$0xff] %vm941, %v956
        %v958 = vld [vmem:[%s3 + $0x8] sm:$0xff]
        %v959 = vmul.f32 %v739, %v739
        %v960 = vmul.f32 %v740, %v740
        %v961 = vadd.f32 %v959, %v960
        %962 = vadd.xlane.f32.xlu0 %v961
        %v963 = vpop.xlane.xlu0 %962
        %v964 = vadd.f32 %v958, %v963
        %965 = vst.msk [vmem:[%s3 + $0x8] sm:$0xff] %vm950, %v964
        %v966 = vld [vmem:[%s3 + $0x10] sm:$0xff]
        %v967 = vadd.f32 %v934, %v935
        %968 = vadd.xlane.f32.xlu0 %v967
        %v969 = vpop.xlane.xlu0 %968
        %v970 = vadd.f32 %v966, %v969
        %971 = vst.msk [vmem:[%s3 + $0x10] sm:$0xff] %vm941, %v970
        %v972 = vld [vmem:[%s3 + $0x10] sm:$0xff]
        %v973 = vmul.f32 %v934, %v934
        %v974 = vmul.f32 %v935, %v935
        %v975 = vadd.f32 %v973, %v974
        %976 = vadd.xlane.f32.xlu0 %v975
        %v977 = vpop.xlane.xlu0 %976
        %v978 = vadd.f32 %v972, %v977
        %979 = vst.msk [vmem:[%s3 + $0x10] sm:$0xff] %vm950, %v978
        // Predicated region
        $region41: #{tpu_custom_call.1} parent=31 // pred_check
          %p980 = pneg %p96
        $region42: #{tpu_custom_call.1} parent=31 // pred_check_branch
          %982 = sbr.rel (%p980) target = $region44
        $region43: #{tpu_custom_call.1} parent=31 // pred_region
          _
        $region44: #{tpu_custom_call.1} parent=31 // pred_fallthru
          _
        // Predicated region
        $region45: #{tpu_custom_call.1} parent=31 // pred_check
          %p983 = pneg %p96
        $region46: #{tpu_custom_call.1} parent=31 // pred_check_branch
          %985 = sbr.rel (%p983) target = $region48
        $region47: #{tpu_custom_call.1} parent=31 // pred_region
          _
        $region48: #{tpu_custom_call.1} parent=31 // pred_fallthru
          _
      $region32: #{tpu_custom_call.1} parent=5 // pred_fallthru
        _
      %p986 = scmp.le.s32.totalorder 2, %s10
      // Predicated region
      $region49: #{tpu_custom_call.1} parent=5 // pred_check
        %p987 = pneg %p986
      $region50: #{tpu_custom_call.1} parent=5 // pred_check_branch
        %989 = sbr.rel (%p987) target = $region52
      $region51: #{tpu_custom_call.1} parent=5 // pred_region
        %s990 = ssub.s32 %s10, 2
      $region52: #{tpu_custom_call.1} parent=5 // pred_fallthru
        _
    $region6: #{tpu_custom_call.1} parent=1 // loop_footer
      %s14 = sadd.s32 1, %s10
    $region7: #{tpu_custom_call.1} parent=1 // loop_footer_branch
      %9 = sbr.rel target = $region3
    $region8: #{tpu_custom_call.1} parent=1 // loop_exit
      _
    %991 = vsyncpa [#allocation3], 1
    %s992 = scalar_lea.sflag [#allocation3], 1
    %993 = vsyncpa %s992, 1

</llo_original>
